<compile_context>
chip_gen: v7x
topology: tpu7x:2x2x1
jax: 0.10.0
libtpu: 0.0.40
codegen_flags: <defaults>
</compile_context>

<pallas_src>
import jax
import jax.numpy as jnp
from jax import lax
from jax.experimental import pallas as pl
from jax.experimental.pallas import tpu as pltpu


def _round_up(n, m):
    return ((n + m - 1) // m) * m


def make_rnn_classify_kernel(seq_len, batch_pad, vocab_pad, hidden):
    """Fused gather + RNN recurrence + classifier kernel.

    Refs:
      tok_ref   : (B_pad, L)        int32  token ids (padding rows carry id 0)
      wslab_ref : (V_pad + D, D)    bf16   rows [0:V_pad]  = emb @ W_ih^T + (b_ih+b_hh)
                                           rows [V_pad: ]  = W_hh^T
      cls_ref   : (D + 8, C_pad)    bf16   rows [0:D] = W_cls^T (lane-padded),
                                           rows [D:D+8] = b_cls replicated
      out_ref   : (B_pad, C_pad)    f32    padded logits (lane-dense store)
    """
    def kernel(tok_ref, wslab_ref, cls_ref, out_ref):
        c_pad = out_ref.shape[1]

        tok = tok_ref[...]                                              # (B_pad, L) i32
        lane_ids = lax.broadcasted_iota(jnp.int32, (batch_pad, vocab_pad), 1)

        table = wslab_ref[0:vocab_pad, :]                               # (V_pad, D) bf16
        w_hh = wslab_ref[vocab_pad:vocab_pad + hidden, :]               # (D, D)     bf16

        def xproj(t):
            # Per-timestep one-hot gather: one (B_pad,V_pad)@(V_pad,D) MXU push,
            # independent of h, so it interleaves under the recurrence pushes.
            # Note: ids >= vocab_size (< V_pad) would silently gather a zero row;
            # acceptable for trusted inputs (mirrors review caveat).
            onehot = (tok[:, t:t + 1] == lane_ids).astype(jnp.float32)
            return jnp.dot(onehot.astype(jnp.bfloat16), table,
                           preferred_element_type=jnp.float32)          # (B_pad, D) f32

        # h_0 = 0  =>  h_1 = tanh(xproj_0): skip the first h @ W_hh entirely.
        h = jnp.tanh(xproj(0))
        # Short static trip count -> fully unrolled; h stays in vregs (f32).
        for t in range(1, seq_len):
            pre = xproj(t) + jnp.dot(h.astype(jnp.bfloat16), w_hh,
                                     preferred_element_type=jnp.float32)
            h = jnp.tanh(pre)

        # Classifier on the last hidden state; lane-dense (C padded to 128) store.
        w_cls = cls_ref[0:hidden, :]                                    # (D, C_pad) bf16
        if batch_pad == 8:
            bias = cls_ref[hidden:hidden + 8, :].astype(jnp.float32)    # (8, C_pad)
        else:
            bias = jnp.broadcast_to(
                cls_ref[hidden:hidden + 1, :].astype(jnp.float32),
                (batch_pad, c_pad))
        out_ref[...] = jnp.dot(h.astype(jnp.bfloat16), w_cls,
                               preferred_element_type=jnp.float32) + bias

    return kernel


def init_params(key, vocab_size, vector_dim, sentence_length):
    """Synthetic parameters with the nn.Module's shapes + kernel-ready packed slabs."""
    D = vector_dim
    C = sentence_length + 1
    k = jax.random.split(key, 7)
    scale = 0.1
    emb = scale * jax.random.normal(k[0], (vocab_size, D), jnp.float32)
    emb = emb.at[0].set(0.0)                    # padding_idx=0 (forward only)
    w_ih = scale * jax.random.normal(k[1], (D, D), jnp.float32)   # (hidden, input)
    w_hh = scale * jax.random.normal(k[2], (D, D), jnp.float32)   # (hidden, hidden)
    b_ih = scale * jax.random.normal(k[3], (D,), jnp.float32)
    b_hh = scale * jax.random.normal(k[4], (D,), jnp.float32)
    w_cls = scale * jax.random.normal(k[5], (C, D), jnp.float32)  # (out, in)
    b_cls = scale * jax.random.normal(k[6], (C,), jnp.float32)

    # ---- kernel-ready packed slabs ----------------------------------------
    v_pad = _round_up(vocab_size, 128)          # lane-dense one-hot width
    c_pad = _round_up(C, 128)                   # lane-dense logits width

    # Fold input projection + both RNN biases into one gatherable table and pack
    # it with W_hh^T into ONE weight slab (single HBM->VMEM DMA).
    xproj = emb @ w_ih.T + (b_ih + b_hh)[None, :]                 # (V, D)
    wslab = jnp.zeros((v_pad + D, D), jnp.float32)
    wslab = wslab.at[:vocab_size].set(xproj).at[v_pad:v_pad + D].set(w_hh.T)

    # Classifier slab: W_cls^T (lane-padded) + 8 replicated bias rows.
    cls_slab = jnp.zeros((D + 8, c_pad), jnp.float32)
    cls_slab = cls_slab.at[:D, :C].set(w_cls.T)
    cls_slab = cls_slab.at[D:, :C].set(jnp.broadcast_to(b_cls, (8, C)))

    return {
        # original module parameters (used only by the pure-JAX reference)
        "embedding": emb, "w_ih": w_ih, "w_hh": w_hh,
        "b_ih": b_ih, "b_hh": b_hh, "w_cls": w_cls, "b_cls": b_cls,
        # kernel-ready (bf16 MXU operands; accumulation stays f32 in-kernel)
        "wslab": wslab.astype(jnp.bfloat16),       # (V_pad + D, D)
        "cls_slab": cls_slab.astype(jnp.bfloat16),  # (D + 8, C_pad)
    }


@jax.jit
def torch_model_forward(x_tokens, params):
    """Equivalent of TorchModel.forward(x) with y=None -> logits (B, C)."""
    B, L = x_tokens.shape
    wslab = params["wslab"]
    cls_slab = params["cls_slab"]
    D = wslab.shape[1]
    v_pad = wslab.shape[0] - D
    c_pad = cls_slab.shape[1]
    C = params["b_cls"].shape[0]
    b_pad = _round_up(max(B, 8), 8)             # full f32 sublane tiles

    # Tiny integer prep, fused under jit: pad batch to 8 sublanes; tokens are one
    # dense (B_pad, L) int32 tile (no 1-lane-wide strided column DMA).
    tok = jnp.pad(x_tokens.astype(jnp.int32), ((0, b_pad - B), (0, 0)))

    vmem = pl.BlockSpec(memory_space=pltpu.MemorySpace.VMEM)
    out_pad = pl.pallas_call(
        make_rnn_classify_kernel(L, b_pad, v_pad, D),
        out_shape=jax.ShapeDtypeStruct((b_pad, c_pad), jnp.float32),
        in_specs=[vmem] * 3,
        out_specs=vmem,
    )(tok, wslab, cls_slab)
    return out_pad[:B, :C]


def reference_forward(x_tokens, params):
    """Pure-JAX f32 mirror of the PyTorch forward (correctness check)."""
    x = jnp.take(params["embedding"], x_tokens, axis=0)             # (B, L, D)
    B, L, D = x.shape
    h = jnp.zeros((B, D), jnp.float32)
    bias = params["b_ih"] + params["b_hh"]
    for t in range(L):
        h = jnp.tanh(x[:, t, :] @ params["w_ih"].T + h @ params["w_hh"].T + bias)
    return h @ params["w_cls"].T + params["b_cls"]


if __name__ == "__main__":
    # Small shapes consistent with the module: vector_dim=32, sentence_length=8,
    # vocab of 20 tokens (index 0 is padding), batch=2.
    vector_dim = 32
    sentence_length = 8
    vocab_size = 20
    batch = 2

    key = jax.random.PRNGKey(0)
    k_params, k_x = jax.random.split(key)
    params = init_params(k_params, vocab_size, vector_dim, sentence_length)
    x_tokens = jax.random.randint(k_x, (batch, sentence_length), 1, vocab_size,
                                  dtype=jnp.int32)

    logits = jax.block_until_ready(torch_model_forward(x_tokens, params))

    ref = reference_forward(x_tokens, params)
    assert logits.shape == (batch, sentence_length + 1)
    # bf16 MXU operands (f32 accumulate, f32 elementwise) -> relaxed tolerance
    # vs the pure-f32 reference.
    max_err = float(jnp.max(jnp.abs(logits - ref)))
    assert jnp.allclose(logits, ref, rtol=2e-2, atol=2e-2), max_err

    # TODO(synk): training-mode path (cross_entropy loss when y is given) is not
    # part of the kernel; only the inference forward (logits) is implemented.
    print("KERNEL_OK")
</pallas_src>

<mosaic_0001>
module attributes {stable_mosaic.version = 11 : i64} {
  func.func @kernel(%arg0: memref<8x8xi32, #tpu.memory_space<vmem>>, %arg1: memref<160x32xbf16, #tpu.memory_space<vmem>>, %arg2: memref<40x128xbf16, #tpu.memory_space<vmem>>, %arg3: memref<8x128xf32, #tpu.memory_space<vmem>>) attributes {dimension_semantics = [], scalar_prefetch = 0 : i64, scratch_operands = 0 : i64, tpu.core_type = #tpu.core_type<tc>} {
    %c0 = arith.constant 0 : index
    %c0_0 = arith.constant 0 : index
    %0 = vector.load %arg0[%c0, %c0_0] : memref<8x8xi32, #tpu.memory_space<vmem>>, vector<8x8xi32>
    %1 = tpu.iota {dimensions = array<i32: 1>} : vector<8x128xi32>
    %c0_1 = arith.constant 0 : index
    %c0_2 = arith.constant 0 : index
    %2 = vector.load %arg1[%c0_1, %c0_2] : memref<160x32xbf16, #tpu.memory_space<vmem>>, vector<128x32xbf16>
    %c128 = arith.constant 128 : index
    %c0_3 = arith.constant 0 : index
    %3 = vector.load %arg1[%c128, %c0_3] : memref<160x32xbf16, #tpu.memory_space<vmem>>, vector<32x32xbf16>
    %4 = vector.extract_strided_slice %0 {offsets = [0, 0], sizes = [8, 1], strides = [1, 1]} : vector<8x8xi32> to vector<8x1xi32>
    %5 = vector.broadcast %4 : vector<8x1xi32> to vector<8x128xi32>
    %6 = arith.cmpi eq, %5, %1 : vector<8x128xi32>
    %7 = arith.extui %6 : vector<8x128xi1> to vector<8x128xi32>
    %8 = arith.sitofp %7 : vector<8x128xi32> to vector<8x128xf32>
    %9 = arith.truncf %8 : vector<8x128xf32> to vector<8x128xbf16>
    %cst = arith.constant dense<0.000000e+00> : vector<8x32xf32>
    %10 = tpu.matmul %9, %2, %cst {dimension_numbers = #tpu.dot_dimension_numbers<[1], [0], [0], [1], [0, 0, 1, 1], [], []>} : vector<8x128xbf16>, vector<128x32xbf16>, vector<8x32xf32> -> vector<8x32xf32>
    %11 = math.tanh %10 : vector<8x32xf32>
    %12 = vector.extract_strided_slice %0 {offsets = [0, 1], sizes = [8, 1], strides = [1, 1]} : vector<8x8xi32> to vector<8x1xi32>
    %13 = vector.broadcast %12 : vector<8x1xi32> to vector<8x128xi32>
    %14 = arith.cmpi eq, %13, %1 : vector<8x128xi32>
    %15 = arith.extui %14 : vector<8x128xi1> to vector<8x128xi32>
    %16 = arith.sitofp %15 : vector<8x128xi32> to vector<8x128xf32>
    %17 = arith.truncf %16 : vector<8x128xf32> to vector<8x128xbf16>
    %cst_4 = arith.constant dense<0.000000e+00> : vector<8x32xf32>
    %18 = tpu.matmul %17, %2, %cst_4 {dimension_numbers = #tpu.dot_dimension_numbers<[1], [0], [0], [1], [0, 0, 1, 1], [], []>} : vector<8x128xbf16>, vector<128x32xbf16>, vector<8x32xf32> -> vector<8x32xf32>
    %19 = arith.truncf %11 : vector<8x32xf32> to vector<8x32xbf16>
    %cst_5 = arith.constant dense<0.000000e+00> : vector<8x32xf32>
    %20 = tpu.matmul %19, %3, %cst_5 {dimension_numbers = #tpu.dot_dimension_numbers<[1], [0], [0], [1], [0, 0, 1, 1], [], []>} : vector<8x32xbf16>, vector<32x32xbf16>, vector<8x32xf32> -> vector<8x32xf32>
    %21 = arith.addf %18, %20 : vector<8x32xf32>
    %22 = math.tanh %21 : vector<8x32xf32>
    %23 = vector.extract_strided_slice %0 {offsets = [0, 2], sizes = [8, 1], strides = [1, 1]} : vector<8x8xi32> to vector<8x1xi32>
    %24 = vector.broadcast %23 : vector<8x1xi32> to vector<8x128xi32>
    %25 = arith.cmpi eq, %24, %1 : vector<8x128xi32>
    %26 = arith.extui %25 : vector<8x128xi1> to vector<8x128xi32>
    %27 = arith.sitofp %26 : vector<8x128xi32> to vector<8x128xf32>
    %28 = arith.truncf %27 : vector<8x128xf32> to vector<8x128xbf16>
    %cst_6 = arith.constant dense<0.000000e+00> : vector<8x32xf32>
    %29 = tpu.matmul %28, %2, %cst_6 {dimension_numbers = #tpu.dot_dimension_numbers<[1], [0], [0], [1], [0, 0, 1, 1], [], []>} : vector<8x128xbf16>, vector<128x32xbf16>, vector<8x32xf32> -> vector<8x32xf32>
    %30 = arith.truncf %22 : vector<8x32xf32> to vector<8x32xbf16>
    %cst_7 = arith.constant dense<0.000000e+00> : vector<8x32xf32>
    %31 = tpu.matmul %30, %3, %cst_7 {dimension_numbers = #tpu.dot_dimension_numbers<[1], [0], [0], [1], [0, 0, 1, 1], [], []>} : vector<8x32xbf16>, vector<32x32xbf16>, vector<8x32xf32> -> vector<8x32xf32>
    %32 = arith.addf %29, %31 : vector<8x32xf32>
    %33 = math.tanh %32 : vector<8x32xf32>
    %34 = vector.extract_strided_slice %0 {offsets = [0, 3], sizes = [8, 1], strides = [1, 1]} : vector<8x8xi32> to vector<8x1xi32>
    %35 = vector.broadcast %34 : vector<8x1xi32> to vector<8x128xi32>
    %36 = arith.cmpi eq, %35, %1 : vector<8x128xi32>
    %37 = arith.extui %36 : vector<8x128xi1> to vector<8x128xi32>
    %38 = arith.sitofp %37 : vector<8x128xi32> to vector<8x128xf32>
    %39 = arith.truncf %38 : vector<8x128xf32> to vector<8x128xbf16>
    %cst_8 = arith.constant dense<0.000000e+00> : vector<8x32xf32>
    %40 = tpu.matmul %39, %2, %cst_8 {dimension_numbers = #tpu.dot_dimension_numbers<[1], [0], [0], [1], [0, 0, 1, 1], [], []>} : vector<8x128xbf16>, vector<128x32xbf16>, vector<8x32xf32> -> vector<8x32xf32>
    %41 = arith.truncf %33 : vector<8x32xf32> to vector<8x32xbf16>
    %cst_9 = arith.constant dense<0.000000e+00> : vector<8x32xf32>
    %42 = tpu.matmul %41, %3, %cst_9 {dimension_numbers = #tpu.dot_dimension_numbers<[1], [0], [0], [1], [0, 0, 1, 1], [], []>} : vector<8x32xbf16>, vector<32x32xbf16>, vector<8x32xf32> -> vector<8x32xf32>
    %43 = arith.addf %40, %42 : vector<8x32xf32>
    %44 = math.tanh %43 : vector<8x32xf32>
    %45 = vector.extract_strided_slice %0 {offsets = [0, 4], sizes = [8, 1], strides = [1, 1]} : vector<8x8xi32> to vector<8x1xi32>
    %46 = vector.broadcast %45 : vector<8x1xi32> to vector<8x128xi32>
    %47 = arith.cmpi eq, %46, %1 : vector<8x128xi32>
    %48 = arith.extui %47 : vector<8x128xi1> to vector<8x128xi32>
    %49 = arith.sitofp %48 : vector<8x128xi32> to vector<8x128xf32>
    %50 = arith.truncf %49 : vector<8x128xf32> to vector<8x128xbf16>
    %cst_10 = arith.constant dense<0.000000e+00> : vector<8x32xf32>
    %51 = tpu.matmul %50, %2, %cst_10 {dimension_numbers = #tpu.dot_dimension_numbers<[1], [0], [0], [1], [0, 0, 1, 1], [], []>} : vector<8x128xbf16>, vector<128x32xbf16>, vector<8x32xf32> -> vector<8x32xf32>
    %52 = arith.truncf %44 : vector<8x32xf32> to vector<8x32xbf16>
    %cst_11 = arith.constant dense<0.000000e+00> : vector<8x32xf32>
    %53 = tpu.matmul %52, %3, %cst_11 {dimension_numbers = #tpu.dot_dimension_numbers<[1], [0], [0], [1], [0, 0, 1, 1], [], []>} : vector<8x32xbf16>, vector<32x32xbf16>, vector<8x32xf32> -> vector<8x32xf32>
    %54 = arith.addf %51, %53 : vector<8x32xf32>
    %55 = math.tanh %54 : vector<8x32xf32>
    %56 = vector.extract_strided_slice %0 {offsets = [0, 5], sizes = [8, 1], strides = [1, 1]} : vector<8x8xi32> to vector<8x1xi32>
    %57 = vector.broadcast %56 : vector<8x1xi32> to vector<8x128xi32>
    %58 = arith.cmpi eq, %57, %1 : vector<8x128xi32>
    %59 = arith.extui %58 : vector<8x128xi1> to vector<8x128xi32>
    %60 = arith.sitofp %59 : vector<8x128xi32> to vector<8x128xf32>
    %61 = arith.truncf %60 : vector<8x128xf32> to vector<8x128xbf16>
    %cst_12 = arith.constant dense<0.000000e+00> : vector<8x32xf32>
    %62 = tpu.matmul %61, %2, %cst_12 {dimension_numbers = #tpu.dot_dimension_numbers<[1], [0], [0], [1], [0, 0, 1, 1], [], []>} : vector<8x128xbf16>, vector<128x32xbf16>, vector<8x32xf32> -> vector<8x32xf32>
    %63 = arith.truncf %55 : vector<8x32xf32> to vector<8x32xbf16>
    %cst_13 = arith.constant dense<0.000000e+00> : vector<8x32xf32>
    %64 = tpu.matmul %63, %3, %cst_13 {dimension_numbers = #tpu.dot_dimension_numbers<[1], [0], [0], [1], [0, 0, 1, 1], [], []>} : vector<8x32xbf16>, vector<32x32xbf16>, vector<8x32xf32> -> vector<8x32xf32>
    %65 = arith.addf %62, %64 : vector<8x32xf32>
    %66 = math.tanh %65 : vector<8x32xf32>
    %67 = vector.extract_strided_slice %0 {offsets = [0, 6], sizes = [8, 1], strides = [1, 1]} : vector<8x8xi32> to vector<8x1xi32>
    %68 = vector.broadcast %67 : vector<8x1xi32> to vector<8x128xi32>
    %69 = arith.cmpi eq, %68, %1 : vector<8x128xi32>
    %70 = arith.extui %69 : vector<8x128xi1> to vector<8x128xi32>
    %71 = arith.sitofp %70 : vector<8x128xi32> to vector<8x128xf32>
    %72 = arith.truncf %71 : vector<8x128xf32> to vector<8x128xbf16>
    %cst_14 = arith.constant dense<0.000000e+00> : vector<8x32xf32>
    %73 = tpu.matmul %72, %2, %cst_14 {dimension_numbers = #tpu.dot_dimension_numbers<[1], [0], [0], [1], [0, 0, 1, 1], [], []>} : vector<8x128xbf16>, vector<128x32xbf16>, vector<8x32xf32> -> vector<8x32xf32>
    %74 = arith.truncf %66 : vector<8x32xf32> to vector<8x32xbf16>
    %cst_15 = arith.constant dense<0.000000e+00> : vector<8x32xf32>
    %75 = tpu.matmul %74, %3, %cst_15 {dimension_numbers = #tpu.dot_dimension_numbers<[1], [0], [0], [1], [0, 0, 1, 1], [], []>} : vector<8x32xbf16>, vector<32x32xbf16>, vector<8x32xf32> -> vector<8x32xf32>
    %76 = arith.addf %73, %75 : vector<8x32xf32>
    %77 = math.tanh %76 : vector<8x32xf32>
    %78 = vector.extract_strided_slice %0 {offsets = [0, 7], sizes = [8, 1], strides = [1, 1]} : vector<8x8xi32> to vector<8x1xi32>
    %79 = vector.broadcast %78 : vector<8x1xi32> to vector<8x128xi32>
    %80 = arith.cmpi eq, %79, %1 : vector<8x128xi32>
    %81 = arith.extui %80 : vector<8x128xi1> to vector<8x128xi32>
    %82 = arith.sitofp %81 : vector<8x128xi32> to vector<8x128xf32>
    %83 = arith.truncf %82 : vector<8x128xf32> to vector<8x128xbf16>
    %cst_16 = arith.constant dense<0.000000e+00> : vector<8x32xf32>
    %84 = tpu.matmul %83, %2, %cst_16 {dimension_numbers = #tpu.dot_dimension_numbers<[1], [0], [0], [1], [0, 0, 1, 1], [], []>} : vector<8x128xbf16>, vector<128x32xbf16>, vector<8x32xf32> -> vector<8x32xf32>
    %85 = arith.truncf %77 : vector<8x32xf32> to vector<8x32xbf16>
    %cst_17 = arith.constant dense<0.000000e+00> : vector<8x32xf32>
    %86 = tpu.matmul %85, %3, %cst_17 {dimension_numbers = #tpu.dot_dimension_numbers<[1], [0], [0], [1], [0, 0, 1, 1], [], []>} : vector<8x32xbf16>, vector<32x32xbf16>, vector<8x32xf32> -> vector<8x32xf32>
    %87 = arith.addf %84, %86 : vector<8x32xf32>
    %88 = math.tanh %87 : vector<8x32xf32>
    %c0_18 = arith.constant 0 : index
    %c0_19 = arith.constant 0 : index
    %89 = vector.load %arg2[%c0_18, %c0_19] : memref<40x128xbf16, #tpu.memory_space<vmem>>, vector<32x128xbf16>
    %c32 = arith.constant 32 : index
    %c0_20 = arith.constant 0 : index
    %90 = vector.load %arg2[%c32, %c0_20] : memref<40x128xbf16, #tpu.memory_space<vmem>>, vector<8x128xbf16>
    %91 = arith.extf %90 : vector<8x128xbf16> to vector<8x128xf32>
    %92 = arith.truncf %88 : vector<8x32xf32> to vector<8x32xbf16>
    %cst_21 = arith.constant dense<0.000000e+00> : vector<8x128xf32>
    %93 = tpu.matmul %92, %89, %cst_21 {dimension_numbers = #tpu.dot_dimension_numbers<[1], [0], [0], [1], [0, 0, 1, 1], [], []>} : vector<8x32xbf16>, vector<32x128xbf16>, vector<8x128xf32> -> vector<8x128xf32>
    %94 = arith.addf %93, %91 : vector<8x128xf32>
    %c0_22 = arith.constant 0 : index
    %c0_23 = arith.constant 0 : index
    %95 = vector.load %arg3[%c0_22, %c0_23] : memref<8x128xf32, #tpu.memory_space<vmem>>, vector<8x128xf32>
    tpu.vector_store %arg3[%c0_22, %c0_23], %94 {strides = array<i32>} : memref<8x128xf32, #tpu.memory_space<vmem>>, vector<8x128xf32>,
    return
  }
}

</mosaic_0001>

<llo_original>
// kernel: torch_model_forward.1
$region0: #{torch_model_forward.1}
  #allocation0 [shape = 'u32[]', space=smem, size = 0x4, offset = 0x4, fixed_abs, tag = 'smem constant byte address 0x4 - core index']
  #allocation1 [shape = 'u32[144,128]{1,0:T(1,128)}', space=vmem, size = 0x12000, scoped, tag = 'internal scratch']
  %s0 = inlined_call_operand.vmem [shape: s32[8,8], index: 0, kind: input, shape index: {}]
  %s1 = inlined_call_operand.vmem [shape: bf16[160,32], index: 1, kind: input, shape index: {}]
  %s2 = inlined_call_operand.vmem [shape: bf16[40,128], index: 2, kind: input, shape index: {}]
  %s3 = inlined_call_operand.vmem [shape: f32[8,128], index: 3, kind: output, shape index: {}]
  %s4 = sld [smem:[#allocation0]]
  $region22: #{torch_model_forward.1} parent=0
    _
  %s6 = ssub.s32 1, %s4
  %s7 = scalar_select 0, %s6, %s4
  // Predicated region
  $region2: #{torch_model_forward.1} parent=0 // pred_check
    _
  $region3: #{torch_model_forward.1} parent=0 // pred_check_branch
    %9 = sbr.rel (0) target = $region5
  $region4: #{torch_model_forward.1} parent=0 // pred_region
    _
  $region5: #{torch_model_forward.1} parent=0 // pred_fallthru
    _
  // Predicated region
  $region6: #{torch_model_forward.1} parent=0 // pred_check
    _
  $region7: #{torch_model_forward.1} parent=0 // pred_check_branch
    %11 = sbr.rel (0) target = $region9
  $region8: #{torch_model_forward.1} parent=0 // pred_region
    _
  $region9: #{torch_model_forward.1} parent=0 // pred_fallthru
    _
  // Predicated region
  $region10: #{torch_model_forward.1} parent=0 // pred_check
    _
  $region11: #{torch_model_forward.1} parent=0 // pred_check_branch
    %13 = sbr.rel (0) target = $region13
  $region12: #{torch_model_forward.1} parent=0 // pred_region
    _
  $region13: #{torch_model_forward.1} parent=0 // pred_fallthru
    _
  %v15 = vld [vmem:[%s0] sm:$0xff]
  %v16 = vlaneseq
  %v17 = vand.u32 %v16, 127
  %v18 = vld [vmem:[%s1] sm:$0xf]
  %v19 = vld [vmem:[%s1 + $0x4] sm:$0xf]
  %v20 = vld [vmem:[%s1 + $0x8] sm:$0xf]
  %v21 = vld [vmem:[%s1 + $0xc] sm:$0xf]
  %v22 = vld [vmem:[%s1 + $0x10] sm:$0xf]
  %v23 = vld [vmem:[%s1 + $0x14] sm:$0xf]
  %v24 = vld [vmem:[%s1 + $0x18] sm:$0xf]
  %v25 = vld [vmem:[%s1 + $0x1c] sm:$0xf]
  %v26 = vld [vmem:[%s1 + $0x20] sm:$0xf]
  %v27 = vld [vmem:[%s1 + $0x24] sm:$0xf]
  %v28 = vld [vmem:[%s1 + $0x28] sm:$0xf]
  %v29 = vld [vmem:[%s1 + $0x2c] sm:$0xf]
  %v30 = vld [vmem:[%s1 + $0x30] sm:$0xf]
  %v31 = vld [vmem:[%s1 + $0x34] sm:$0xf]
  %v32 = vld [vmem:[%s1 + $0x38] sm:$0xf]
  %v33 = vld [vmem:[%s1 + $0x3c] sm:$0xf]
  %v34 = vld [vmem:[%s1 + $0x40] sm:$0xf]
  %v35 = vld [vmem:[%s1 + $0x44] sm:$0xf]
  %v36 = vld [vmem:[%s1 + $0x48] sm:$0xf]
  %v37 = vld [vmem:[%s1 + $0x4c] sm:$0xf]
  %38 = vset.pattern.permute.xlu0 0
  %39 = vperm.xlu0 %38, %v15
  %v40 = vpop.permute.xlu0 %39
  %vm41 = vcmp.eq.s32.totalorder %v40, %v17
  %v42 = vsel %vm41, 1, 0
  %v43 = vcvt.s32.f32 %v42
  %v44 = vpack.c.bf16 %v43, %v43
  %v61 = vunpack.c.l.b16 %v18
  %v62 = vunpack.c.l.b16 %v19
  %v63 = vunpack.c.l.b16 %v20
  %v64 = vunpack.c.l.b16 %v21
  %v65 = vunpack.c.l.b16 %v22
  %v66 = vunpack.c.l.b16 %v23
  %v67 = vunpack.c.l.b16 %v24
  %v68 = vunpack.c.l.b16 %v25
  %v69 = vunpack.c.l.b16 %v26
  %v70 = vunpack.c.l.b16 %v27
  %v71 = vunpack.c.l.b16 %v28
  %v72 = vunpack.c.l.b16 %v29
  %v73 = vunpack.c.l.b16 %v30
  %v74 = vunpack.c.l.b16 %v31
  %v75 = vunpack.c.l.b16 %v32
  %v76 = vunpack.c.l.b16 %v33
  %v77 = vpack.c.b16 %v62, %v61
  %v78 = vpack.c.b16 %v64, %v63
  %v79 = vpack.c.b16 %v66, %v65
  %v80 = vpack.c.b16 %v68, %v67
  %v81 = vpack.c.b16 %v70, %v69
  %v82 = vpack.c.b16 %v72, %v71
  %v83 = vpack.c.b16 %v74, %v73
  %v84 = vpack.c.b16 %v76, %v75
  %93 = vmatprep.subr.bf16.mxu0 0
  %94 = vmatpush1.bf16.msra.mxu0 %v77
  %95 = vmatprep.subr.bf16.mxu0 0
  %96 = vmatpush1.bf16.msra.mxu0 %v78
  %97 = vmatprep.subr.bf16.mxu0 0
  %98 = vmatpush1.bf16.msra.mxu0 %v79
  %99 = vmatprep.subr.bf16.mxu0 0
  %100 = vmatpush1.bf16.msra.mxu0 %v80
  %101 = vmatprep.subr.bf16.mxu0 0
  %102 = vmatpush1.bf16.msra.mxu0 %v81
  %103 = vmatprep.subr.bf16.mxu0 0
  %104 = vmatpush1.bf16.msra.mxu0 %v82
  %105 = vmatprep.subr.bf16.mxu0 0
  %106 = vmatpush1.bf16.msra.mxu0 %v83
  %107 = vmatprep.subr.bf16.mxu0 0
  %108 = vmatpush1.bf16.msra.mxu0 %v84
  %109 = vmatprep.subr.bf16.mxu0 0
  %110 = vmatpush1.bf16.msra.mxu0 0
  %111 = vmatprep.subr.bf16.mxu0 0
  %112 = vmatpush1.bf16.msra.mxu0 0
  %113 = vmatprep.subr.bf16.mxu0 0
  %114 = vmatpush1.bf16.msra.mxu0 0
  %115 = vmatprep.subr.bf16.mxu0 0
  %116 = vmatpush1.bf16.msra.mxu0 0
  %117 = vmatprep.subr.bf16.mxu0 0
  %118 = vmatpush1.bf16.msra.mxu0 0
  %119 = vmatprep.subr.bf16.mxu0 0
  %120 = vmatpush1.bf16.msra.mxu0 0
  %121 = vmatprep.subr.bf16.mxu0 0
  %122 = vmatpush1.bf16.msra.mxu0 0
  %123 = vmatprep.subr.bf16.mxu0 0
  %124 = vmatpush1.bf16.msra.mxu0 0
  %125 = vmatprep.mubr.bf16.mxu0 0
  %126 = vmatmul.mubr.bf16.gmra.mrb[0].mxu0 %v44
  %v127 = vpop.f32.mrb[0].mxu0
  %v128 = vadd.f32 0.0, %v127
  %v129 = vpop.f32.mrb[0].mxu0
  %v130 = vpop.f32.mrb[0].mxu0
  %v131 = vpop.f32.mrb[0].mxu0
  %132 = vdwg.mxu0
  %v133 = vtanh.pop %v128
  %134 = vset.pattern.permute.xlu0 1
  %135 = vperm.xlu0 %134, %v15
  %v136 = vpop.permute.xlu0 %135
  %vm137 = vcmp.eq.s32.totalorder %v136, %v17
  %v138 = vsel %vm137, 1, 0
  %v139 = vcvt.s32.f32 %v138
  %v140 = vpack.c.bf16 %v139, %v139
  %v141 = vpack.c.bf16 %v133, %v133
  %v146 = vunpack.c.l.b16 %v34
  %v147 = vunpack.c.l.b16 %v35
  %v148 = vunpack.c.l.b16 %v36
  %v149 = vunpack.c.l.b16 %v37
  %v150 = vpack.c.b16 %v147, %v146
  %v151 = vpack.c.b16 %v149, %v148
  %vm154 = vcmask 261120
  %v156 = vsel %vm154, %v141, 0
  %158 = vmatprep.subr.bf16.mxu0 0
  %159 = vmatpush1.bf16.msra.mxu0 %v150
  %160 = vmatprep.subr.bf16.mxu0 0
  %161 = vmatpush1.bf16.msra.mxu0 %v151
  %162 = vmatprep.subr.bf16.mxu0 0
  %163 = vmatpush1.bf16.msra.mxu0 0
  %164 = vmatprep.subr.bf16.mxu0 0
  %165 = vmatpush1.bf16.msra.mxu0 0
  %166 = vmatprep.subr.bf16.mxu0 0
  %167 = vmatpush1.bf16.msra.mxu0 0
  %168 = vmatprep.subr.bf16.mxu0 0
  %169 = vmatpush1.bf16.msra.mxu0 0
  %170 = vmatprep.subr.bf16.mxu0 0
  %171 = vmatpush1.bf16.msra.mxu0 0
  %172 = vmatprep.subr.bf16.mxu0 0
  %173 = vmatpush1.bf16.msra.mxu0 0
  %174 = vmatprep.subr.bf16.mxu0 0
  %175 = vmatpush1.bf16.msra.mxu0 0
  %176 = vmatprep.subr.bf16.mxu0 0
  %177 = vmatpush1.bf16.msra.mxu0 0
  %178 = vmatprep.subr.bf16.mxu0 0
  %179 = vmatpush1.bf16.msra.mxu0 0
  %180 = vmatprep.subr.bf16.mxu0 0
  %181 = vmatpush1.bf16.msra.mxu0 0
  %182 = vmatprep.subr.bf16.mxu0 0
  %183 = vmatpush1.bf16.msra.mxu0 0
  %184 = vmatprep.subr.bf16.mxu0 0
  %185 = vmatpush1.bf16.msra.mxu0 0
  %186 = vmatprep.subr.bf16.mxu0 0
  %187 = vmatpush1.bf16.msra.mxu0 0
  %188 = vmatprep.subr.bf16.mxu0 0
  %189 = vmatpush1.bf16.msra.mxu0 0
  %190 = vmatprep.mubr.bf16.mxu0 0
  %191 = vmatmul.mubr.bf16.gmra.mrb[0].mxu0 %v156
  %v192 = vpop.f32.mrb[0].mxu0
  %v193 = vadd.f32 0.0, %v192
  %v194 = vpop.f32.mrb[0].mxu0
  %v195 = vpop.f32.mrb[0].mxu0
  %v196 = vpop.f32.mrb[0].mxu0
  %197 = vdwg.mxu0
  %198 = vmatprep.subr.bf16.mxu0 0
  %199 = vmatpush1.bf16.msra.mxu0 %v77
  %200 = vmatprep.subr.bf16.mxu0 0
  %201 = vmatpush1.bf16.msra.mxu0 %v78
  %202 = vmatprep.subr.bf16.mxu0 0
  %203 = vmatpush1.bf16.msra.mxu0 %v79
  %204 = vmatprep.subr.bf16.mxu0 0
  %205 = vmatpush1.bf16.msra.mxu0 %v80
  %206 = vmatprep.subr.bf16.mxu0 0
  %207 = vmatpush1.bf16.msra.mxu0 %v81
  %208 = vmatprep.subr.bf16.mxu0 0
  %209 = vmatpush1.bf16.msra.mxu0 %v82
  %210 = vmatprep.subr.bf16.mxu0 0
  %211 = vmatpush1.bf16.msra.mxu0 %v83
  %212 = vmatprep.subr.bf16.mxu0 0
  %213 = vmatpush1.bf16.msra.mxu0 %v84
  %214 = vmatprep.subr.bf16.mxu0 0
  %215 = vmatpush1.bf16.msra.mxu0 0
  %216 = vmatprep.subr.bf16.mxu0 0
  %217 = vmatpush1.bf16.msra.mxu0 0
  %218 = vmatprep.subr.bf16.mxu0 0
  %219 = vmatpush1.bf16.msra.mxu0 0
  %220 = vmatprep.subr.bf16.mxu0 0
  %221 = vmatpush1.bf16.msra.mxu0 0
  %222 = vmatprep.subr.bf16.mxu0 0
  %223 = vmatpush1.bf16.msra.mxu0 0
  %224 = vmatprep.subr.bf16.mxu0 0
  %225 = vmatpush1.bf16.msra.mxu0 0
  %226 = vmatprep.subr.bf16.mxu0 0
  %227 = vmatpush1.bf16.msra.mxu0 0
  %228 = vmatprep.subr.bf16.mxu0 0
  %229 = vmatpush1.bf16.msra.mxu0 0
  %230 = vmatprep.mubr.bf16.mxu0 0
  %231 = vmatmul.mubr.bf16.gmra.mrb[0].mxu0 %v140
  %v232 = vpop.f32.mrb[0].mxu0
  %v233 = vadd.f32 %v193, %v232
  %v234 = vpop.f32.mrb[0].mxu0
  %v235 = vpop.f32.mrb[0].mxu0
  %v236 = vpop.f32.mrb[0].mxu0
  %237 = vdwg.mxu0
  %v238 = vtanh.pop %v233
  %239 = vset.pattern.permute.xlu0 2
  %240 = vperm.xlu0 %239, %v15
  %v241 = vpop.permute.xlu0 %240
  %vm242 = vcmp.eq.s32.totalorder %v241, %v17
  %v243 = vsel %vm242, 1, 0
  %v244 = vcvt.s32.f32 %v243
  %v245 = vpack.c.bf16 %v244, %v244
  %v246 = vpack.c.bf16 %v238, %v238
  %v248 = vsel %vm154, %v246, 0
  %250 = vmatprep.subr.bf16.mxu0 0
  %251 = vmatpush1.bf16.msra.mxu0 %v150
  %252 = vmatprep.subr.bf16.mxu0 0
  %253 = vmatpush1.bf16.msra.mxu0 %v151
  %254 = vmatprep.subr.bf16.mxu0 0
  %255 = vmatpush1.bf16.msra.mxu0 0
  %256 = vmatprep.subr.bf16.mxu0 0
  %257 = vmatpush1.bf16.msra.mxu0 0
  %258 = vmatprep.subr.bf16.mxu0 0
  %259 = vmatpush1.bf16.msra.mxu0 0
  %260 = vmatprep.subr.bf16.mxu0 0
  %261 = vmatpush1.bf16.msra.mxu0 0
  %262 = vmatprep.subr.bf16.mxu0 0
  %263 = vmatpush1.bf16.msra.mxu0 0
  %264 = vmatprep.subr.bf16.mxu0 0
  %265 = vmatpush1.bf16.msra.mxu0 0
  %266 = vmatprep.subr.bf16.mxu0 0
  %267 = vmatpush1.bf16.msra.mxu0 0
  %268 = vmatprep.subr.bf16.mxu0 0
  %269 = vmatpush1.bf16.msra.mxu0 0
  %270 = vmatprep.subr.bf16.mxu0 0
  %271 = vmatpush1.bf16.msra.mxu0 0
  %272 = vmatprep.subr.bf16.mxu0 0
  %273 = vmatpush1.bf16.msra.mxu0 0
  %274 = vmatprep.subr.bf16.mxu0 0
  %275 = vmatpush1.bf16.msra.mxu0 0
  %276 = vmatprep.subr.bf16.mxu0 0
  %277 = vmatpush1.bf16.msra.mxu0 0
  %278 = vmatprep.subr.bf16.mxu0 0
  %279 = vmatpush1.bf16.msra.mxu0 0
  %280 = vmatprep.subr.bf16.mxu0 0
  %281 = vmatpush1.bf16.msra.mxu0 0
  %282 = vmatprep.mubr.bf16.mxu0 0
  %283 = vmatmul.mubr.bf16.gmra.mrb[0].mxu0 %v248
  %v284 = vpop.f32.mrb[0].mxu0
  %v285 = vadd.f32 0.0, %v284
  %v286 = vpop.f32.mrb[0].mxu0
  %v287 = vpop.f32.mrb[0].mxu0
  %v288 = vpop.f32.mrb[0].mxu0
  %289 = vdwg.mxu0
  %290 = vmatprep.subr.bf16.mxu0 0
  %291 = vmatpush1.bf16.msra.mxu0 %v77
  %292 = vmatprep.subr.bf16.mxu0 0
  %293 = vmatpush1.bf16.msra.mxu0 %v78
  %294 = vmatprep.subr.bf16.mxu0 0
  %295 = vmatpush1.bf16.msra.mxu0 %v79
  %296 = vmatprep.subr.bf16.mxu0 0
  %297 = vmatpush1.bf16.msra.mxu0 %v80
  %298 = vmatprep.subr.bf16.mxu0 0
  %299 = vmatpush1.bf16.msra.mxu0 %v81
  %300 = vmatprep.subr.bf16.mxu0 0
  %301 = vmatpush1.bf16.msra.mxu0 %v82
  %302 = vmatprep.subr.bf16.mxu0 0
  %303 = vmatpush1.bf16.msra.mxu0 %v83
  %304 = vmatprep.subr.bf16.mxu0 0
  %305 = vmatpush1.bf16.msra.mxu0 %v84
  %306 = vmatprep.subr.bf16.mxu0 0
  %307 = vmatpush1.bf16.msra.mxu0 0
  %308 = vmatprep.subr.bf16.mxu0 0
  %309 = vmatpush1.bf16.msra.mxu0 0
  %310 = vmatprep.subr.bf16.mxu0 0
  %311 = vmatpush1.bf16.msra.mxu0 0
  %312 = vmatprep.subr.bf16.mxu0 0
  %313 = vmatpush1.bf16.msra.mxu0 0
  %314 = vmatprep.subr.bf16.mxu0 0
  %315 = vmatpush1.bf16.msra.mxu0 0
  %316 = vmatprep.subr.bf16.mxu0 0
  %317 = vmatpush1.bf16.msra.mxu0 0
  %318 = vmatprep.subr.bf16.mxu0 0
  %319 = vmatpush1.bf16.msra.mxu0 0
  %320 = vmatprep.subr.bf16.mxu0 0
  %321 = vmatpush1.bf16.msra.mxu0 0
  %322 = vmatprep.mubr.bf16.mxu0 0
  %323 = vmatmul.mubr.bf16.gmra.mrb[0].mxu0 %v245
  %v324 = vpop.f32.mrb[0].mxu0
  %v325 = vadd.f32 %v285, %v324
  %v326 = vpop.f32.mrb[0].mxu0
  %v327 = vpop.f32.mrb[0].mxu0
  %v328 = vpop.f32.mrb[0].mxu0
  %329 = vdwg.mxu0
  %v330 = vtanh.pop %v325
  %331 = vset.pattern.permute.xlu0 3
  %332 = vperm.xlu0 %331, %v15
  %v333 = vpop.permute.xlu0 %332
  %vm334 = vcmp.eq.s32.totalorder %v333, %v17
  %v335 = vsel %vm334, 1, 0
  %v336 = vcvt.s32.f32 %v335
  %v337 = vpack.c.bf16 %v336, %v336
  %v338 = vpack.c.bf16 %v330, %v330
  %v340 = vsel %vm154, %v338, 0
  %342 = vmatprep.subr.bf16.mxu0 0
  %343 = vmatpush1.bf16.msra.mxu0 %v150
  %344 = vmatprep.subr.bf16.mxu0 0
  %345 = vmatpush1.bf16.msra.mxu0 %v151
  %346 = vmatprep.subr.bf16.mxu0 0
  %347 = vmatpush1.bf16.msra.mxu0 0
  %348 = vmatprep.subr.bf16.mxu0 0
  %349 = vmatpush1.bf16.msra.mxu0 0
  %350 = vmatprep.subr.bf16.mxu0 0
  %351 = vmatpush1.bf16.msra.mxu0 0
  %352 = vmatprep.subr.bf16.mxu0 0
  %353 = vmatpush1.bf16.msra.mxu0 0
  %354 = vmatprep.subr.bf16.mxu0 0
  %355 = vmatpush1.bf16.msra.mxu0 0
  %356 = vmatprep.subr.bf16.mxu0 0
  %357 = vmatpush1.bf16.msra.mxu0 0
  %358 = vmatprep.subr.bf16.mxu0 0
  %359 = vmatpush1.bf16.msra.mxu0 0
  %360 = vmatprep.subr.bf16.mxu0 0
  %361 = vmatpush1.bf16.msra.mxu0 0
  %362 = vmatprep.subr.bf16.mxu0 0
  %363 = vmatpush1.bf16.msra.mxu0 0
  %364 = vmatprep.subr.bf16.mxu0 0
  %365 = vmatpush1.bf16.msra.mxu0 0
  %366 = vmatprep.subr.bf16.mxu0 0
  %367 = vmatpush1.bf16.msra.mxu0 0
  %368 = vmatprep.subr.bf16.mxu0 0
  %369 = vmatpush1.bf16.msra.mxu0 0
  %370 = vmatprep.subr.bf16.mxu0 0
  %371 = vmatpush1.bf16.msra.mxu0 0
  %372 = vmatprep.subr.bf16.mxu0 0
  %373 = vmatpush1.bf16.msra.mxu0 0
  %374 = vmatprep.mubr.bf16.mxu0 0
  %375 = vmatmul.mubr.bf16.gmra.mrb[0].mxu0 %v340
  %v376 = vpop.f32.mrb[0].mxu0
  %v377 = vadd.f32 0.0, %v376
  %v378 = vpop.f32.mrb[0].mxu0
  %v379 = vpop.f32.mrb[0].mxu0
  %v380 = vpop.f32.mrb[0].mxu0
  %381 = vdwg.mxu0
  %382 = vmatprep.subr.bf16.mxu0 0
  %383 = vmatpush1.bf16.msra.mxu0 %v77
  %384 = vmatprep.subr.bf16.mxu0 0
  %385 = vmatpush1.bf16.msra.mxu0 %v78
  %386 = vmatprep.subr.bf16.mxu0 0
  %387 = vmatpush1.bf16.msra.mxu0 %v79
  %388 = vmatprep.subr.bf16.mxu0 0
  %389 = vmatpush1.bf16.msra.mxu0 %v80
  %390 = vmatprep.subr.bf16.mxu0 0
  %391 = vmatpush1.bf16.msra.mxu0 %v81
  %392 = vmatprep.subr.bf16.mxu0 0
  %393 = vmatpush1.bf16.msra.mxu0 %v82
  %394 = vmatprep.subr.bf16.mxu0 0
  %395 = vmatpush1.bf16.msra.mxu0 %v83
  %396 = vmatprep.subr.bf16.mxu0 0
  %397 = vmatpush1.bf16.msra.mxu0 %v84
  %398 = vmatprep.subr.bf16.mxu0 0
  %399 = vmatpush1.bf16.msra.mxu0 0
  %400 = vmatprep.subr.bf16.mxu0 0
  %401 = vmatpush1.bf16.msra.mxu0 0
  %402 = vmatprep.subr.bf16.mxu0 0
  %403 = vmatpush1.bf16.msra.mxu0 0
  %404 = vmatprep.subr.bf16.mxu0 0
  %405 = vmatpush1.bf16.msra.mxu0 0
  %406 = vmatprep.subr.bf16.mxu0 0
  %407 = vmatpush1.bf16.msra.mxu0 0
  %408 = vmatprep.subr.bf16.mxu0 0
  %409 = vmatpush1.bf16.msra.mxu0 0
  %410 = vmatprep.subr.bf16.mxu0 0
  %411 = vmatpush1.bf16.msra.mxu0 0
  %412 = vmatprep.subr.bf16.mxu0 0
  %413 = vmatpush1.bf16.msra.mxu0 0
  %414 = vmatprep.mubr.bf16.mxu0 0
  %415 = vmatmul.mubr.bf16.gmra.mrb[0].mxu0 %v337
  %v416 = vpop.f32.mrb[0].mxu0
  %v417 = vadd.f32 %v377, %v416
  %v418 = vpop.f32.mrb[0].mxu0
  %v419 = vpop.f32.mrb[0].mxu0
  %v420 = vpop.f32.mrb[0].mxu0
  %421 = vdwg.mxu0
  %v422 = vtanh.pop %v417
  %423 = vset.pattern.permute.xlu0 4
  %424 = vperm.xlu0 %423, %v15
  %v425 = vpop.permute.xlu0 %424
  %vm426 = vcmp.eq.s32.totalorder %v425, %v17
  %v427 = vsel %vm426, 1, 0
  %v428 = vcvt.s32.f32 %v427
  %v429 = vpack.c.bf16 %v428, %v428
  %v430 = vpack.c.bf16 %v422, %v422
  %v432 = vsel %vm154, %v430, 0
  %434 = vmatprep.subr.bf16.mxu0 0
  %435 = vmatpush1.bf16.msra.mxu0 %v150
  %436 = vmatprep.subr.bf16.mxu0 0
  %437 = vmatpush1.bf16.msra.mxu0 %v151
  %438 = vmatprep.subr.bf16.mxu0 0
  %439 = vmatpush1.bf16.msra.mxu0 0
  %440 = vmatprep.subr.bf16.mxu0 0
  %441 = vmatpush1.bf16.msra.mxu0 0
  %442 = vmatprep.subr.bf16.mxu0 0
  %443 = vmatpush1.bf16.msra.mxu0 0
  %444 = vmatprep.subr.bf16.mxu0 0
  %445 = vmatpush1.bf16.msra.mxu0 0
  %446 = vmatprep.subr.bf16.mxu0 0
  %447 = vmatpush1.bf16.msra.mxu0 0
  %448 = vmatprep.subr.bf16.mxu0 0
  %449 = vmatpush1.bf16.msra.mxu0 0
  %450 = vmatprep.subr.bf16.mxu0 0
  %451 = vmatpush1.bf16.msra.mxu0 0
  %452 = vmatprep.subr.bf16.mxu0 0
  %453 = vmatpush1.bf16.msra.mxu0 0
  %454 = vmatprep.subr.bf16.mxu0 0
  %455 = vmatpush1.bf16.msra.mxu0 0
  %456 = vmatprep.subr.bf16.mxu0 0
  %457 = vmatpush1.bf16.msra.mxu0 0
  %458 = vmatprep.subr.bf16.mxu0 0
  %459 = vmatpush1.bf16.msra.mxu0 0
  %460 = vmatprep.subr.bf16.mxu0 0
  %461 = vmatpush1.bf16.msra.mxu0 0
  %462 = vmatprep.subr.bf16.mxu0 0
  %463 = vmatpush1.bf16.msra.mxu0 0
  %464 = vmatprep.subr.bf16.mxu0 0
  %465 = vmatpush1.bf16.msra.mxu0 0
  %466 = vmatprep.mubr.bf16.mxu0 0
  %467 = vmatmul.mubr.bf16.gmra.mrb[0].mxu0 %v432
  %v468 = vpop.f32.mrb[0].mxu0
  %v469 = vadd.f32 0.0, %v468
  %v470 = vpop.f32.mrb[0].mxu0
  %v471 = vpop.f32.mrb[0].mxu0
  %v472 = vpop.f32.mrb[0].mxu0
  %473 = vdwg.mxu0
  %474 = vmatprep.subr.bf16.mxu0 0
  %475 = vmatpush1.bf16.msra.mxu0 %v77
  %476 = vmatprep.subr.bf16.mxu0 0
  %477 = vmatpush1.bf16.msra.mxu0 %v78
  %478 = vmatprep.subr.bf16.mxu0 0
  %479 = vmatpush1.bf16.msra.mxu0 %v79
  %480 = vmatprep.subr.bf16.mxu0 0
  %481 = vmatpush1.bf16.msra.mxu0 %v80
  %482 = vmatprep.subr.bf16.mxu0 0
  %483 = vmatpush1.bf16.msra.mxu0 %v81
  %484 = vmatprep.subr.bf16.mxu0 0
  %485 = vmatpush1.bf16.msra.mxu0 %v82
  %486 = vmatprep.subr.bf16.mxu0 0
  %487 = vmatpush1.bf16.msra.mxu0 %v83
  %488 = vmatprep.subr.bf16.mxu0 0
  %489 = vmatpush1.bf16.msra.mxu0 %v84
  %490 = vmatprep.subr.bf16.mxu0 0
  %491 = vmatpush1.bf16.msra.mxu0 0
  %492 = vmatprep.subr.bf16.mxu0 0
  %493 = vmatpush1.bf16.msra.mxu0 0
  %494 = vmatprep.subr.bf16.mxu0 0
  %495 = vmatpush1.bf16.msra.mxu0 0
  %496 = vmatprep.subr.bf16.mxu0 0
  %497 = vmatpush1.bf16.msra.mxu0 0
  %498 = vmatprep.subr.bf16.mxu0 0
  %499 = vmatpush1.bf16.msra.mxu0 0
  %500 = vmatprep.subr.bf16.mxu0 0
  %501 = vmatpush1.bf16.msra.mxu0 0
  %502 = vmatprep.subr.bf16.mxu0 0
  %503 = vmatpush1.bf16.msra.mxu0 0
  %504 = vmatprep.subr.bf16.mxu0 0
  %505 = vmatpush1.bf16.msra.mxu0 0
  %506 = vmatprep.mubr.bf16.mxu0 0
  %507 = vmatmul.mubr.bf16.gmra.mrb[0].mxu0 %v429
  %v508 = vpop.f32.mrb[0].mxu0
  %v509 = vadd.f32 %v469, %v508
  %v510 = vpop.f32.mrb[0].mxu0
  %v511 = vpop.f32.mrb[0].mxu0
  %v512 = vpop.f32.mrb[0].mxu0
  %513 = vdwg.mxu0
  %v514 = vtanh.pop %v509
  %515 = vset.pattern.permute.xlu0 5
  %516 = vperm.xlu0 %515, %v15
  %v517 = vpop.permute.xlu0 %516
  %vm518 = vcmp.eq.s32.totalorder %v517, %v17
  %v519 = vsel %vm518, 1, 0
  %v520 = vcvt.s32.f32 %v519
  %v521 = vpack.c.bf16 %v520, %v520
  %v522 = vpack.c.bf16 %v514, %v514
  %v524 = vsel %vm154, %v522, 0
  %526 = vmatprep.subr.bf16.mxu0 0
  %527 = vmatpush1.bf16.msra.mxu0 %v150
  %528 = vmatprep.subr.bf16.mxu0 0
  %529 = vmatpush1.bf16.msra.mxu0 %v151
  %530 = vmatprep.subr.bf16.mxu0 0
  %531 = vmatpush1.bf16.msra.mxu0 0
  %532 = vmatprep.subr.bf16.mxu0 0
  %533 = vmatpush1.bf16.msra.mxu0 0
  %534 = vmatprep.subr.bf16.mxu0 0
  %535 = vmatpush1.bf16.msra.mxu0 0
  %536 = vmatprep.subr.bf16.mxu0 0
  %537 = vmatpush1.bf16.msra.mxu0 0
  %538 = vmatprep.subr.bf16.mxu0 0
  %539 = vmatpush1.bf16.msra.mxu0 0
  %540 = vmatprep.subr.bf16.mxu0 0
  %541 = vmatpush1.bf16.msra.mxu0 0
  %542 = vmatprep.subr.bf16.mxu0 0
  %543 = vmatpush1.bf16.msra.mxu0 0
  %544 = vmatprep.subr.bf16.mxu0 0
  %545 = vmatpush1.bf16.msra.mxu0 0
  %546 = vmatprep.subr.bf16.mxu0 0
  %547 = vmatpush1.bf16.msra.mxu0 0
  %548 = vmatprep.subr.bf16.mxu0 0
  %549 = vmatpush1.bf16.msra.mxu0 0
  %550 = vmatprep.subr.bf16.mxu0 0
  %551 = vmatpush1.bf16.msra.mxu0 0
  %552 = vmatprep.subr.bf16.mxu0 0
  %553 = vmatpush1.bf16.msra.mxu0 0
  %554 = vmatprep.subr.bf16.mxu0 0
  %555 = vmatpush1.bf16.msra.mxu0 0
  %556 = vmatprep.subr.bf16.mxu0 0
  %557 = vmatpush1.bf16.msra.mxu0 0
  %558 = vmatprep.mubr.bf16.mxu0 0
  %559 = vmatmul.mubr.bf16.gmra.mrb[0].mxu0 %v524
  %v560 = vpop.f32.mrb[0].mxu0
  %v561 = vadd.f32 0.0, %v560
  %v562 = vpop.f32.mrb[0].mxu0
  %v563 = vpop.f32.mrb[0].mxu0
  %v564 = vpop.f32.mrb[0].mxu0
  %565 = vdwg.mxu0
  %566 = vmatprep.subr.bf16.mxu0 0
  %567 = vmatpush1.bf16.msra.mxu0 %v77
  %568 = vmatprep.subr.bf16.mxu0 0
  %569 = vmatpush1.bf16.msra.mxu0 %v78
  %570 = vmatprep.subr.bf16.mxu0 0
  %571 = vmatpush1.bf16.msra.mxu0 %v79
  %572 = vmatprep.subr.bf16.mxu0 0
  %573 = vmatpush1.bf16.msra.mxu0 %v80
  %574 = vmatprep.subr.bf16.mxu0 0
  %575 = vmatpush1.bf16.msra.mxu0 %v81
  %576 = vmatprep.subr.bf16.mxu0 0
  %577 = vmatpush1.bf16.msra.mxu0 %v82
  %578 = vmatprep.subr.bf16.mxu0 0
  %579 = vmatpush1.bf16.msra.mxu0 %v83
  %580 = vmatprep.subr.bf16.mxu0 0
  %581 = vmatpush1.bf16.msra.mxu0 %v84
  %582 = vmatprep.subr.bf16.mxu0 0
  %583 = vmatpush1.bf16.msra.mxu0 0
  %584 = vmatprep.subr.bf16.mxu0 0
  %585 = vmatpush1.bf16.msra.mxu0 0
  %586 = vmatprep.subr.bf16.mxu0 0
  %587 = vmatpush1.bf16.msra.mxu0 0
  %588 = vmatprep.subr.bf16.mxu0 0
  %589 = vmatpush1.bf16.msra.mxu0 0
  %590 = vmatprep.subr.bf16.mxu0 0
  %591 = vmatpush1.bf16.msra.mxu0 0
  %592 = vmatprep.subr.bf16.mxu0 0
  %593 = vmatpush1.bf16.msra.mxu0 0
  %594 = vmatprep.subr.bf16.mxu0 0
  %595 = vmatpush1.bf16.msra.mxu0 0
  %596 = vmatprep.subr.bf16.mxu0 0
  %597 = vmatpush1.bf16.msra.mxu0 0
  %598 = vmatprep.mubr.bf16.mxu0 0
  %599 = vmatmul.mubr.bf16.gmra.mrb[0].mxu0 %v521
  %v600 = vpop.f32.mrb[0].mxu0
  %v601 = vadd.f32 %v561, %v600
  %v602 = vpop.f32.mrb[0].mxu0
  %v603 = vpop.f32.mrb[0].mxu0
  %v604 = vpop.f32.mrb[0].mxu0
  %605 = vdwg.mxu0
  %v606 = vtanh.pop %v601
  %607 = vset.pattern.permute.xlu0 6
  %608 = vperm.xlu0 %607, %v15
  %v609 = vpop.permute.xlu0 %608
  %vm610 = vcmp.eq.s32.totalorder %v609, %v17
  %v611 = vsel %vm610, 1, 0
  %v612 = vcvt.s32.f32 %v611
  %v613 = vpack.c.bf16 %v612, %v612
  %v614 = vpack.c.bf16 %v606, %v606
  %v616 = vsel %vm154, %v614, 0
  %618 = vmatprep.subr.bf16.mxu0 0
  %619 = vmatpush1.bf16.msra.mxu0 %v150
  %620 = vmatprep.subr.bf16.mxu0 0
  %621 = vmatpush1.bf16.msra.mxu0 %v151
  %622 = vmatprep.subr.bf16.mxu0 0
  %623 = vmatpush1.bf16.msra.mxu0 0
  %624 = vmatprep.subr.bf16.mxu0 0
  %625 = vmatpush1.bf16.msra.mxu0 0
  %626 = vmatprep.subr.bf16.mxu0 0
  %627 = vmatpush1.bf16.msra.mxu0 0
  %628 = vmatprep.subr.bf16.mxu0 0
  %629 = vmatpush1.bf16.msra.mxu0 0
  %630 = vmatprep.subr.bf16.mxu0 0
  %631 = vmatpush1.bf16.msra.mxu0 0
  %632 = vmatprep.subr.bf16.mxu0 0
  %633 = vmatpush1.bf16.msra.mxu0 0
  %634 = vmatprep.subr.bf16.mxu0 0
  %635 = vmatpush1.bf16.msra.mxu0 0
  %636 = vmatprep.subr.bf16.mxu0 0
  %637 = vmatpush1.bf16.msra.mxu0 0
  %638 = vmatprep.subr.bf16.mxu0 0
  %639 = vmatpush1.bf16.msra.mxu0 0
  %640 = vmatprep.subr.bf16.mxu0 0
  %641 = vmatpush1.bf16.msra.mxu0 0
  %642 = vmatprep.subr.bf16.mxu0 0
  %643 = vmatpush1.bf16.msra.mxu0 0
  %644 = vmatprep.subr.bf16.mxu0 0
  %645 = vmatpush1.bf16.msra.mxu0 0
  %646 = vmatprep.subr.bf16.mxu0 0
  %647 = vmatpush1.bf16.msra.mxu0 0
  %648 = vmatprep.subr.bf16.mxu0 0
  %649 = vmatpush1.bf16.msra.mxu0 0
  %650 = vmatprep.mubr.bf16.mxu0 0
  %651 = vmatmul.mubr.bf16.gmra.mrb[0].mxu0 %v616
  %v652 = vpop.f32.mrb[0].mxu0
  %v653 = vadd.f32 0.0, %v652
  %v654 = vpop.f32.mrb[0].mxu0
  %v655 = vpop.f32.mrb[0].mxu0
  %v656 = vpop.f32.mrb[0].mxu0
  %657 = vdwg.mxu0
  %658 = vmatprep.subr.bf16.mxu0 0
  %659 = vmatpush1.bf16.msra.mxu0 %v77
  %660 = vmatprep.subr.bf16.mxu0 0
  %661 = vmatpush1.bf16.msra.mxu0 %v78
  %662 = vmatprep.subr.bf16.mxu0 0
  %663 = vmatpush1.bf16.msra.mxu0 %v79
  %664 = vmatprep.subr.bf16.mxu0 0
  %665 = vmatpush1.bf16.msra.mxu0 %v80
  %666 = vmatprep.subr.bf16.mxu0 0
  %667 = vmatpush1.bf16.msra.mxu0 %v81
  %668 = vmatprep.subr.bf16.mxu0 0
  %669 = vmatpush1.bf16.msra.mxu0 %v82
  %670 = vmatprep.subr.bf16.mxu0 0
  %671 = vmatpush1.bf16.msra.mxu0 %v83
  %672 = vmatprep.subr.bf16.mxu0 0
  %673 = vmatpush1.bf16.msra.mxu0 %v84
  %674 = vmatprep.subr.bf16.mxu0 0
  %675 = vmatpush1.bf16.msra.mxu0 0
  %676 = vmatprep.subr.bf16.mxu0 0
  %677 = vmatpush1.bf16.msra.mxu0 0
  %678 = vmatprep.subr.bf16.mxu0 0
  %679 = vmatpush1.bf16.msra.mxu0 0
  %680 = vmatprep.subr.bf16.mxu0 0
  %681 = vmatpush1.bf16.msra.mxu0 0
  %682 = vmatprep.subr.bf16.mxu0 0
  %683 = vmatpush1.bf16.msra.mxu0 0
  %684 = vmatprep.subr.bf16.mxu0 0
  %685 = vmatpush1.bf16.msra.mxu0 0
  %686 = vmatprep.subr.bf16.mxu0 0
  %687 = vmatpush1.bf16.msra.mxu0 0
  %688 = vmatprep.subr.bf16.mxu0 0
  %689 = vmatpush1.bf16.msra.mxu0 0
  %690 = vmatprep.mubr.bf16.mxu0 0
  %691 = vmatmul.mubr.bf16.gmra.mrb[0].mxu0 %v613
  %v692 = vpop.f32.mrb[0].mxu0
  %v693 = vadd.f32 %v653, %v692
  %v694 = vpop.f32.mrb[0].mxu0
  %v695 = vpop.f32.mrb[0].mxu0
  %v696 = vpop.f32.mrb[0].mxu0
  %697 = vdwg.mxu0
  %v698 = vtanh.pop %v693
  %699 = vset.pattern.permute.xlu0 7
  %700 = vperm.xlu0 %699, %v15
  %v701 = vpop.permute.xlu0 %700
  %vm702 = vcmp.eq.s32.totalorder %v701, %v17
  %v703 = vsel %vm702, 1, 0
  %v704 = vcvt.s32.f32 %v703
  %v705 = vpack.c.bf16 %v704, %v704
  %v706 = vpack.c.bf16 %v698, %v698
  %v708 = vsel %vm154, %v706, 0
  %710 = vmatprep.subr.bf16.mxu0 0
  %711 = vmatpush1.bf16.msra.mxu0 %v150
  %712 = vmatprep.subr.bf16.mxu0 0
  %713 = vmatpush1.bf16.msra.mxu0 %v151
  %714 = vmatprep.subr.bf16.mxu0 0
  %715 = vmatpush1.bf16.msra.mxu0 0
  %716 = vmatprep.subr.bf16.mxu0 0
  %717 = vmatpush1.bf16.msra.mxu0 0
  %718 = vmatprep.subr.bf16.mxu0 0
  %719 = vmatpush1.bf16.msra.mxu0 0
  %720 = vmatprep.subr.bf16.mxu0 0
  %721 = vmatpush1.bf16.msra.mxu0 0
  %722 = vmatprep.subr.bf16.mxu0 0
  %723 = vmatpush1.bf16.msra.mxu0 0
  %724 = vmatprep.subr.bf16.mxu0 0
  %725 = vmatpush1.bf16.msra.mxu0 0
  %726 = vmatprep.subr.bf16.mxu0 0
  %727 = vmatpush1.bf16.msra.mxu0 0
  %728 = vmatprep.subr.bf16.mxu0 0
  %729 = vmatpush1.bf16.msra.mxu0 0
  %730 = vmatprep.subr.bf16.mxu0 0
  %731 = vmatpush1.bf16.msra.mxu0 0
  %732 = vmatprep.subr.bf16.mxu0 0
  %733 = vmatpush1.bf16.msra.mxu0 0
  %734 = vmatprep.subr.bf16.mxu0 0
  %735 = vmatpush1.bf16.msra.mxu0 0
  %736 = vmatprep.subr.bf16.mxu0 0
  %737 = vmatpush1.bf16.msra.mxu0 0
  %738 = vmatprep.subr.bf16.mxu0 0
  %739 = vmatpush1.bf16.msra.mxu0 0
  %740 = vmatprep.subr.bf16.mxu0 0
  %741 = vmatpush1.bf16.msra.mxu0 0
  %742 = vmatprep.mubr.bf16.mxu0 0
  %743 = vmatmul.mubr.bf16.gmra.mrb[0].mxu0 %v708
  %v744 = vpop.f32.mrb[0].mxu0
  %v745 = vadd.f32 0.0, %v744
  %v746 = vpop.f32.mrb[0].mxu0
  %v747 = vpop.f32.mrb[0].mxu0
  %v748 = vpop.f32.mrb[0].mxu0
  %749 = vdwg.mxu0
  %750 = vmatprep.subr.bf16.mxu0 0
  %751 = vmatpush1.bf16.msra.mxu0 %v77
  %752 = vmatprep.subr.bf16.mxu0 0
  %753 = vmatpush1.bf16.msra.mxu0 %v78
  %754 = vmatprep.subr.bf16.mxu0 0
  %755 = vmatpush1.bf16.msra.mxu0 %v79
  %756 = vmatprep.subr.bf16.mxu0 0
  %757 = vmatpush1.bf16.msra.mxu0 %v80
  %758 = vmatprep.subr.bf16.mxu0 0
  %759 = vmatpush1.bf16.msra.mxu0 %v81
  %760 = vmatprep.subr.bf16.mxu0 0
  %761 = vmatpush1.bf16.msra.mxu0 %v82
  %762 = vmatprep.subr.bf16.mxu0 0
  %763 = vmatpush1.bf16.msra.mxu0 %v83
  %764 = vmatprep.subr.bf16.mxu0 0
  %765 = vmatpush1.bf16.msra.mxu0 %v84
  %766 = vmatprep.subr.bf16.mxu0 0
  %767 = vmatpush1.bf16.msra.mxu0 0
  %768 = vmatprep.subr.bf16.mxu0 0
  %769 = vmatpush1.bf16.msra.mxu0 0
  %770 = vmatprep.subr.bf16.mxu0 0
  %771 = vmatpush1.bf16.msra.mxu0 0
  %772 = vmatprep.subr.bf16.mxu0 0
  %773 = vmatpush1.bf16.msra.mxu0 0
  %774 = vmatprep.subr.bf16.mxu0 0
  %775 = vmatpush1.bf16.msra.mxu0 0
  %776 = vmatprep.subr.bf16.mxu0 0
  %777 = vmatpush1.bf16.msra.mxu0 0
  %778 = vmatprep.subr.bf16.mxu0 0
  %779 = vmatpush1.bf16.msra.mxu0 0
  %780 = vmatprep.subr.bf16.mxu0 0
  %781 = vmatpush1.bf16.msra.mxu0 0
  %782 = vmatprep.mubr.bf16.mxu0 0
  %783 = vmatmul.mubr.bf16.gmra.mrb[0].mxu0 %v705
  %v784 = vpop.f32.mrb[0].mxu0
  %v785 = vadd.f32 %v745, %v784
  %v786 = vpop.f32.mrb[0].mxu0
  %v787 = vpop.f32.mrb[0].mxu0
  %v788 = vpop.f32.mrb[0].mxu0
  %789 = vdwg.mxu0
  %v790 = vtanh.pop %v785
  %v791 = vld [vmem:[%s2] sm:$0xf]
  %v792 = vld [vmem:[%s2 + $0x4] sm:$0xf]
  %v793 = vld [vmem:[%s2 + $0x8] sm:$0xf]
  %v794 = vld [vmem:[%s2 + $0xc] sm:$0xf]
  %v795 = vld [vmem:[%s2 + $0x10] sm:$0xf]
  %v796 = vunpack.c.l.bf16 %v795
  %v797 = vpack.c.bf16 %v790, %v790
  %v802 = vunpack.c.l.b16 %v791
  %v803 = vunpack.c.l.b16 %v792
  %v804 = vunpack.c.l.b16 %v793
  %v805 = vunpack.c.l.b16 %v794
  %v806 = vpack.c.b16 %v803, %v802
  %v807 = vpack.c.b16 %v805, %v804
  %v811 = vsel %vm154, %v797, 0
  %813 = vmatprep.subr.bf16.mxu0 0
  %814 = vmatpush1.bf16.msra.mxu0 %v806
  %815 = vmatprep.subr.bf16.mxu0 0
  %816 = vmatpush1.bf16.msra.mxu0 %v807
  %817 = vmatprep.subr.bf16.mxu0 0
  %818 = vmatpush1.bf16.msra.mxu0 0
  %819 = vmatprep.subr.bf16.mxu0 0
  %820 = vmatpush1.bf16.msra.mxu0 0
  %821 = vmatprep.subr.bf16.mxu0 0
  %822 = vmatpush1.bf16.msra.mxu0 0
  %823 = vmatprep.subr.bf16.mxu0 0
  %824 = vmatpush1.bf16.msra.mxu0 0
  %825 = vmatprep.subr.bf16.mxu0 0
  %826 = vmatpush1.bf16.msra.mxu0 0
  %827 = vmatprep.subr.bf16.mxu0 0
  %828 = vmatpush1.bf16.msra.mxu0 0
  %829 = vmatprep.subr.bf16.mxu0 0
  %830 = vmatpush1.bf16.msra.mxu0 0
  %831 = vmatprep.subr.bf16.mxu0 0
  %832 = vmatpush1.bf16.msra.mxu0 0
  %833 = vmatprep.subr.bf16.mxu0 0
  %834 = vmatpush1.bf16.msra.mxu0 0
  %835 = vmatprep.subr.bf16.mxu0 0
  %836 = vmatpush1.bf16.msra.mxu0 0
  %837 = vmatprep.subr.bf16.mxu0 0
  %838 = vmatpush1.bf16.msra.mxu0 0
  %839 = vmatprep.subr.bf16.mxu0 0
  %840 = vmatpush1.bf16.msra.mxu0 0
  %841 = vmatprep.subr.bf16.mxu0 0
  %842 = vmatpush1.bf16.msra.mxu0 0
  %843 = vmatprep.subr.bf16.mxu0 0
  %844 = vmatpush1.bf16.msra.mxu0 0
  %845 = vmatprep.mubr.bf16.mxu0 0
  %846 = vmatmul.mubr.bf16.gmra.mrb[0].mxu0 %v811
  %v847 = vpop.f32.mrb[0].mxu0
  %v848 = vadd.f32 %v796, %v847
  %v849 = vpop.f32.mrb[0].mxu0
  %v850 = vpop.f32.mrb[0].mxu0
  %v851 = vpop.f32.mrb[0].mxu0
  %852 = vdwg.mxu0
  %853 = vst [vmem:[%s3] sm:$0xff] %v848
  // Predicated region
  $region14: #{torch_model_forward.1} parent=0 // pred_check
    _
  $region15: #{torch_model_forward.1} parent=0 // pred_check_branch
    %855 = sbr.rel (0) target = $region17
  $region16: #{torch_model_forward.1} parent=0 // pred_region
    _
  $region17: #{torch_model_forward.1} parent=0 // pred_fallthru
    _
  // Predicated region
  $region18: #{torch_model_forward.1} parent=0 // pred_check
    _
  $region19: #{torch_model_forward.1} parent=0 // pred_check_branch
    %857 = sbr.rel (0) target = $region21
  $region20: #{torch_model_forward.1} parent=0 // pred_region
    _
  $region21: #{torch_model_forward.1} parent=0 // pred_fallthru
    _

</llo_original>
